<compile_context>
chip_gen: v7x
topology: tpu7x:2x2x1
jax: 0.10.0
libtpu: 0.0.40
codegen_flags: <defaults>
</compile_context>

<pallas_src>
import functools
import math

import jax
import jax.numpy as jnp
from jax.experimental import pallas as pl
from jax.experimental.pallas import tpu as pltpu

_EPS = 1e-5
_SUBLANE = 8      # f32 sublane quantum: Cout padded only to 8 (not 128)
_MAX_TM = 1024    # pixels per grid step; 512-1024 ~ 85% of HBM roofline measured


def _round_up(v, m):
    return ((v + m - 1) // m) * m


def _pick_tm(hw, n_batch):
    """Spatial tile (lane dim of output). Multiple of 128, <= _MAX_TM, and small
    enough that the grid has >= 2 steps so both v7x TensorCores get work."""
    tm = min(_MAX_TM, _round_up(hw, 128))
    if n_batch == 1 and hw > 128:
        tm = min(tm, _round_up(-(-hw // 2), 128))
    return max(tm, 128)


# ------------------------- Pallas kernel -------------------------

def _conv_bn_relu_kernel(a_ref, w_ref, bias_ref, o_ref):
    # a:    (1, Cin, TM)  f32 activation pixels (cast to bf16 here, not in HBM)
    # w:    (Cp, Cin)     bf16 weights with BN scale pre-folded (resident)
    # bias: (Cp, 1)       f32 folded BN bias (resident)
    # o:    (1, Cp, TM)   f32, lane-dense (TM is a multiple of 128) unmasked store
    a = a_ref[0].astype(jnp.bfloat16)                              # (Cin, TM)
    acc = jnp.dot(w_ref[...], a, preferred_element_type=jnp.float32)  # (Cp, TM) f32
    o_ref[0] = jnp.maximum(acc + bias_ref[...], 0.0)               # BN bias + ReLU


_CALL_CACHE = {}


def _conv_call(n_batch, n_tiles, tm, cin, cp):
    """Build (and cache) the tiled fused 1x1-conv + BN + ReLU pallas_call."""
    key = (n_batch, n_tiles, tm, cin, cp)
    if key in _CALL_CACHE:
        return _CALL_CACHE[key]

    hwp = n_tiles * tm
    # Double-buffered working set: A tile + out tile (x2 each), resident W + bias
    # (also double-buffered by the pipeliner), plus ~50% headroom.
    work = 2 * (cin * tm * 4 + cp * tm * 4 + cp * cin * 2 + cp * 4)
    vmem_limit = int(min(48 << 20, max(32 << 20, int(1.5 * work))))

    cost = pl.CostEstimate(
        flops=2 * n_batch * hwp * cin * cp,
        transcendentals=0,
        bytes_accessed=(n_batch * cin * hwp * 4      # A (f32, read once)
                        + cp * cin * 2 + cp * 4      # W (bf16) + bias (f32)
                        + n_batch * cp * hwp * 4))   # out (f32)

    _CALL_CACHE[key] = pl.pallas_call(
        _conv_bn_relu_kernel,
        grid=(n_batch, n_tiles),
        in_specs=[
            # activation: tiled over batch and spatial pixels; channel dim is the
            # full Cin (full-array dim -> exempt from the (8,128) rule, no HBM pad)
            pl.BlockSpec((1, cin, tm), lambda n, i: (n, 0, i)),
            pl.BlockSpec((cp, cin), lambda n, i: (0, 0)),   # weights: resident
            pl.BlockSpec((cp, 1), lambda n, i: (0, 0)),     # BN bias: resident
        ],
        out_specs=pl.BlockSpec((1, cp, tm), lambda n, i: (n, 0, i)),
        out_shape=jax.ShapeDtypeStruct((n_batch, cp, hwp), jnp.float32),
        compiler_params=pltpu.CompilerParams(
            # both grid axes independent -> megacore sharding on v7x
            dimension_semantics=("parallel", "parallel"),
            vmem_limit_bytes=vmem_limit,
        ),
        cost_estimate=cost,
    )
    return _CALL_CACHE[key]


# ------------------------- module forward -------------------------

@functools.partial(jax.jit, static_argnames=("cout",))
def _conv_forward_jit(wmat, bias, x, *, cout):
    N, Cin, H, W = x.shape
    Cp = wmat.shape[0]
    HW = H * W

    tm = _pick_tm(HW, N)
    hwp = _round_up(HW, tm)

    # NCHW is already the (N, Cin, H*W) slab we want: no transpose, no im2col.
    a = x.reshape(N, Cin, HW)
    if hwp != HW:
        a = jnp.pad(a, ((0, 0), (0, 0), (0, hwp - HW)))

    out = _conv_call(N, hwp // tm, tm, Cin, Cp)(a, wmat, bias)   # (N, Cp, hwp) f32

    out = out[:, :cout, :HW]          # drop padded channels / pixels (no-op if aligned)
    return out.reshape(N, cout, H, W)  # straight back to NCHW, no transpose


def conv_forward(params, x):
    """Forward of `Conv(chi, cho)`: 1x1 Conv2d(bias=False) + BN (folded) + ReLU.

    x: (N, Cin, H, W) float32, NCHW exactly like the PyTorch module.
    Returns (N, Cout, H, W) float32.
    """
    return _conv_forward_jit(params["wmat"], params["bias"], x, cout=params["cout"])


# ------------------------- parameters -------------------------

def make_conv_params(key, chi, cho):
    """Deterministic Conv2d(1x1) weight + BatchNorm2d stats, BN-folded & padded."""
    k_w, k_g, k_b, k_m, k_v = jax.random.split(key, 5)
    # PyTorch weight layout is (cho, chi, 1, 1); keep the (cho, chi) matrix.
    w = jax.random.normal(k_w, (cho, chi), jnp.float32) / math.sqrt(chi)
    gamma = 1.0 + 0.1 * jax.random.normal(k_g, (cho,), jnp.float32)
    beta = 0.1 * jax.random.normal(k_b, (cho,), jnp.float32)
    mean = 0.1 * jax.random.normal(k_m, (cho,), jnp.float32)
    var = 1.0 + 0.1 * jax.random.uniform(k_v, (cho,), jnp.float32)
    scale = gamma / jnp.sqrt(var + _EPS)          # folded BN: y = scale*conv(x) + bias
    bias = beta - mean * scale

    cp = _round_up(cho, _SUBLANE)                 # Cout on sublane axis: pad to 8 only
    # BN scale folded into the weight rows; padded rows are zero -> zero output,
    # sliced off in the wrapper.
    wmat = jnp.zeros((cp, chi), jnp.bfloat16).at[:cho, :].set(
        (w * scale[:, None]).astype(jnp.bfloat16))
    bias_p = jnp.zeros((cp, 1), jnp.float32).at[:cho, 0].set(bias)
    return {"w": w, "scale_raw": scale, "bias_raw": bias,
            "wmat": wmat, "bias": bias_p, "cout": cho}


def conv_ref(params, x):
    """Pure-JAX f32 reference (NCHW), matching the PyTorch eval() forward."""
    y = jnp.einsum("nchw,oc->nohw", x, params["w"])
    s = params["scale_raw"].reshape(1, -1, 1, 1)
    b = params["bias_raw"].reshape(1, -1, 1, 1)
    return jnp.maximum(y * s + b, 0.0)


# ------------------------- main -------------------------

if __name__ == "__main__":
    key = jax.random.PRNGKey(0)
    kp_key, kx_key = jax.random.split(key)

    chi, cho = 4, 32
    N, H, W = 2, 16, 16          # H*W = 256 -> TM = 256, grid = (2, 1) = 2 steps

    params = make_conv_params(kp_key, chi, cho)
    x = jax.random.normal(kx_key, (N, chi, H, W), jnp.float32)

    out = jax.block_until_ready(conv_forward(params, x))
    ref = conv_ref(params, x)

    assert out.shape == (N, cho, H, W), out.shape
    assert out.dtype == jnp.float32, out.dtype
    assert bool(jnp.all(jnp.isfinite(out)))
    # bf16 matmul inputs (and bf16-folded BN scale) with f32 accumulation vs f32 ref.
    err = float(jnp.max(jnp.abs(out - ref)))
    assert err < 5e-2, err
    print("KERNEL_OK")
</pallas_src>

<mosaic_0001>
module attributes {stable_mosaic.version = 11 : i64} {
  func.func @_conv_bn_relu_kernel(%arg0: i32, %arg1: i32, %arg2: memref<1x4x256xf32, #tpu.memory_space<vmem>>, %arg3: memref<32x4xbf16, #tpu.memory_space<vmem>>, %arg4: memref<32x1xf32, #tpu.memory_space<vmem>>, %arg5: memref<1x32x256xf32, #tpu.memory_space<vmem>>) attributes {dimension_semantics = [#tpu.dimension_semantics<parallel>, #tpu.dimension_semantics<parallel>], iteration_bounds = array<i64: 2, 1>, scalar_prefetch = 0 : i64, scratch_operands = 0 : i64, tpu.core_type = #tpu.core_type<tc>, window_params = [{transform_indices = @transform_0, window_bounds = array<i64: 1, 4, 256>}, {pipeline_mode = #tpu.pipeline_mode<synchronous>, transform_indices = @transform_1, window_bounds = array<i64: 32, 4>}, {pipeline_mode = #tpu.pipeline_mode<synchronous>, transform_indices = @transform_2, window_bounds = array<i64: 32, 1>}, {transform_indices = @transform_3, window_bounds = array<i64: 1, 32, 256>}]} {
    %c0 = arith.constant 0 : index
    %c0_0 = arith.constant 0 : index
    %c0_1 = arith.constant 0 : index
    %0 = vector.load %arg2[%c0, %c0_0, %c0_1] : memref<1x4x256xf32, #tpu.memory_space<vmem>>, vector<1x4x256xf32>
    %1 = vector.shape_cast %0 : vector<1x4x256xf32> to vector<4x256xf32>
    %2 = arith.truncf %1 : vector<4x256xf32> to vector<4x256xbf16>
    %c0_2 = arith.constant 0 : index
    %c0_3 = arith.constant 0 : index
    %3 = vector.load %arg3[%c0_2, %c0_3] : memref<32x4xbf16, #tpu.memory_space<vmem>>, vector<32x4xbf16>
    %cst = arith.constant dense<0.000000e+00> : vector<32x256xf32>
    %4 = tpu.matmul %3, %2, %cst {dimension_numbers = #tpu.dot_dimension_numbers<[1], [0], [0], [1], [0, 0, 1, 1], [], []>} : vector<32x4xbf16>, vector<4x256xbf16>, vector<32x256xf32> -> vector<32x256xf32>
    %c0_4 = arith.constant 0 : index
    %c0_5 = arith.constant 0 : index
    %5 = vector.load %arg4[%c0_4, %c0_5] : memref<32x1xf32, #tpu.memory_space<vmem>>, vector<32x1xf32>
    %6 = vector.broadcast %5 : vector<32x1xf32> to vector<32x256xf32>
    %7 = arith.addf %4, %6 : vector<32x256xf32>
    %cst_6 = arith.constant 0.000000e+00 : f32
    %8 = vector.broadcast %cst_6 : f32 to vector<32x256xf32>
    %9 = arith.maximumf %7, %8 : vector<32x256xf32>
    %c0_7 = arith.constant 0 : index
    %c0_8 = arith.constant 0 : index
    %c0_9 = arith.constant 0 : index
    %10 = vector.load %arg5[%c0_7, %c0_8, %c0_9] : memref<1x32x256xf32, #tpu.memory_space<vmem>>, vector<1x32x256xf32>
    %11 = vector.shape_cast %10 : vector<1x32x256xf32> to vector<32x256xf32>
    %12 = vector.shape_cast %9 : vector<32x256xf32> to vector<1x32x256xf32>
    tpu.vector_store %arg5[%c0_7, %c0_8, %c0_9], %12 {strides = array<i32>} : memref<1x32x256xf32, #tpu.memory_space<vmem>>, vector<1x32x256xf32>,
    return
  }
  func.func @transform_0(%arg0: i32, %arg1: i32) -> (i32, i32, i32) {
    %c0_i32 = arith.constant 0 : i32
    %c0_i32_0 = arith.constant 0 : i32
    return %arg0, %c0_i32, %arg1 : i32, i32, i32
  }
  func.func @transform_1(%arg0: i32, %arg1: i32) -> (i32, i32) {
    %c0_i32 = arith.constant 0 : i32
    %c0_i32_0 = arith.constant 0 : i32
    %c0_i32_1 = arith.constant 0 : i32
    return %c0_i32, %c0_i32_0 : i32, i32
  }
  func.func @transform_2(%arg0: i32, %arg1: i32) -> (i32, i32) {
    %c0_i32 = arith.constant 0 : i32
    %c0_i32_0 = arith.constant 0 : i32
    %c0_i32_1 = arith.constant 0 : i32
    return %c0_i32, %c0_i32_0 : i32, i32
  }
  func.func @transform_3(%arg0: i32, %arg1: i32) -> (i32, i32, i32) {
    %c0_i32 = arith.constant 0 : i32
    %c0_i32_0 = arith.constant 0 : i32
    return %arg0, %c0_i32, %arg1 : i32, i32, i32
  }
}

</mosaic_0001>

<llo_original>
// kernel: _conv_forward_jit.1
$region0: #{_conv_forward_jit.1}
  #allocation0 [shape = 'u32[]', space=smem, size = 0x4, offset = 0x4, fixed_abs, tag = 'smem constant byte address 0x4 - core index']
  #allocation1 [shape = 'u32[144,128]{1,0:T(1,128)}', space=vmem, size = 0x12000, scoped, tag = 'internal scratch']
  %s0 = inlined_call_operand.vmem [shape: f32[2,4,256], index: 0, kind: input, shape index: {}]
  %s1 = inlined_call_operand.vmem [shape: bf16[32,4], index: 1, kind: input, shape index: {}]
  %s2 = inlined_call_operand.vmem [shape: f32[32,1], index: 2, kind: input, shape index: {}]
  %s3 = inlined_call_operand.vmem [shape: f32[2,32,256], index: 3, kind: output, shape index: {}]
  %s4 = sld [smem:[#allocation0]]
  $region45: #{_conv_forward_jit.1} parent=0
    _
  %s6 = ssub.s32 1, %s4
  %s7 = scalar_select 0, %s6, %s4
  loop: start=0, step=1, limit=4
  $region2: #{_conv_forward_jit.1} parent=0 // loop_pre_header
    _
  $region3: #{_conv_forward_jit.1} parent=0 // loop_header
    %s9 = sphi 0, %s13
    %p10 = scmp.ge.s32.totalorder %s9, 4
    %s16 = sphi 0, %s28
    %s17 = sphi 0, %s24
    %s18 = sphi 0, %s16
    %s19 = sphi 0, %s17
    %s20 = sphi 0, %s18
    %s21 = sphi 0, %s19
    %s33 = sphi 0, %s35
    %s36 = sphi 0, %s33
    %s37 = sphi 0, %s36
    %s53 = sphi 0, %s37
    %s57 = sphi 0, %s57
    %s59 = sphi 0, %s57
    %s60 = sphi 0, %s59
    %s74 = sphi 0, %s60
    %s78 = sphi 0, %s78
    %s80 = sphi 0, %s78
    %s81 = sphi 0, %s80
    %s95 = sphi 0, %s81
    %s103 = sphi 0, %s105
    %s106 = sphi 0, %s103
    %s107 = sphi 0, %s106
    %s123 = sphi 0, %s107
  $region4: #{_conv_forward_jit.1} parent=0 // loop_header_branch
    %12 = sbr.rel (%p10) target = $region8
  $region5: #{_conv_forward_jit.1} parent=0 // loop_body
    %s14 = ssub.s32 %s9, 1
    %s15 = ssub.s32 %s9, 2
    %s22 = sadd.s32 1, %s17
    %p23 = scmp.ge.s32.totalorder %s22, 1
    %s24 = scalar_select %p23, 0, %s22
    %s25 = sadd.s32 1, %s16
    %s26 = scalar_select %p23, %s25, %s16
    %p27 = scmp.ge.s32.totalorder %s26, 2
    %s28 = scalar_select %p27, 0, %s26
    %s29 = ssub.s32 %s16, %s28
    %s30 = ssub.s32 %s17, %s24
    %s31 = sor.u32 %s29, %s30
    %p32 = scmp.eq.s32.totalorder %s31, 0
    %s34 = sadd.s32 %s33, 1
    %s35 = scalar_select %p32, %s33, %s34
    %p38 = pneg %p32
    %p39 = scmp.eq.s32.totalorder %s9, 1
    %p40 = por %p38, %p39
    %p41 = scmp.ne.s32.totalorder %s33, %s36
    %p42 = scmp.eq.s32.totalorder %s9, 0
    %p43 = por %p41, %p42
    %p44 = scmp.ne.s32.totalorder %s33, %s36
    %p45 = scmp.eq.s32.totalorder %s14, 1
    %p46 = por %p44, %p45
    %p47 = scmp.ne.s32.totalorder %s36, %s37
    %p48 = scmp.eq.s32.totalorder %s14, 0
    %p49 = por %p47, %p48
    %p50 = scmp.ne.s32.totalorder %s36, %s37
    %p51 = scmp.eq.s32.totalorder %s15, 1
    %p52 = por %p50, %p51
    %p54 = scmp.ne.s32.totalorder %s37, %s53
    %p55 = scmp.eq.s32.totalorder %s15, 0
    %p56 = por %p54, %p55
    %s58 = sadd.s32 %s57, 1
    %p61 = scmp.eq.s32.totalorder %s9, 1
    %p62 = scmp.ne.s32.totalorder %s57, %s59
    %p63 = scmp.eq.s32.totalorder %s9, 0
    %p64 = por %p62, %p63
    %p65 = scmp.ne.s32.totalorder %s57, %s59
    %p66 = scmp.eq.s32.totalorder %s14, 1
    %p67 = por %p65, %p66
    %p68 = scmp.ne.s32.totalorder %s59, %s60
    %p69 = scmp.eq.s32.totalorder %s14, 0
    %p70 = por %p68, %p69
    %p71 = scmp.ne.s32.totalorder %s59, %s60
    %p72 = scmp.eq.s32.totalorder %s15, 1
    %p73 = por %p71, %p72
    %p75 = scmp.ne.s32.totalorder %s60, %s74
    %p76 = scmp.eq.s32.totalorder %s15, 0
    %p77 = por %p75, %p76
    %s79 = sadd.s32 %s78, 1
    %p82 = scmp.eq.s32.totalorder %s9, 1
    %p83 = scmp.ne.s32.totalorder %s78, %s80
    %p84 = scmp.eq.s32.totalorder %s9, 0
    %p85 = por %p83, %p84
    %p86 = scmp.ne.s32.totalorder %s78, %s80
    %p87 = scmp.eq.s32.totalorder %s14, 1
    %p88 = por %p86, %p87
    %p89 = scmp.ne.s32.totalorder %s80, %s81
    %p90 = scmp.eq.s32.totalorder %s14, 0
    %p91 = por %p89, %p90
    %p92 = scmp.ne.s32.totalorder %s80, %s81
    %p93 = scmp.eq.s32.totalorder %s15, 1
    %p94 = por %p92, %p93
    %p96 = scmp.ne.s32.totalorder %s81, %s95
    %p97 = scmp.eq.s32.totalorder %s15, 0
    %p98 = por %p96, %p97
    %s99 = ssub.s32 %s16, %s28
    %s100 = ssub.s32 %s17, %s24
    %s101 = sor.u32 %s99, %s100
    %p102 = scmp.eq.s32.totalorder %s101, 0
    %s104 = sadd.s32 %s103, 1
    %s105 = scalar_select %p102, %s103, %s104
    %p108 = pneg %p102
    %p109 = scmp.eq.s32.totalorder %s9, 1
    %p110 = por %p108, %p109
    %p111 = scmp.ne.s32.totalorder %s103, %s106
    %p112 = scmp.eq.s32.totalorder %s9, 0
    %p113 = por %p111, %p112
    %p114 = scmp.ne.s32.totalorder %s103, %s106
    %p115 = scmp.eq.s32.totalorder %s14, 1
    %p116 = por %p114, %p115
    %p117 = scmp.ne.s32.totalorder %s106, %s107
    %p118 = scmp.eq.s32.totalorder %s14, 0
    %p119 = por %p117, %p118
    %p120 = scmp.ne.s32.totalorder %s106, %s107
    %p121 = scmp.eq.s32.totalorder %s15, 1
    %p122 = por %p120, %p121
    %p124 = scmp.ne.s32.totalorder %s107, %s123
    %p125 = scmp.eq.s32.totalorder %s15, 0
    %p126 = por %p124, %p125
    %p127 = scmp.le.s32.totalorder 1, %s9
    %p128 = scmp.lt.s32.totalorder %s9, 3
    %p129 = pnand %p127, %p128
    %p130 = pneg %p129
    // Predicated region
    $region9: #{_conv_forward_jit.1} parent=5 // pred_check
      _
    $region10: #{_conv_forward_jit.1} parent=5 // pred_check_branch
      %132 = sbr.rel (%p129) target = $region12
    $region11: #{_conv_forward_jit.1} parent=5 // pred_region
      %s133 = ssub.s32 %s9, 1
      // Predicated region
      $region13: #{_conv_forward_jit.1} parent=11 // pred_check
        %p134 = pneg %p70
      $region14: #{_conv_forward_jit.1} parent=11 // pred_check_branch
        %136 = sbr.rel (%p134) target = $region16
      $region15: #{_conv_forward_jit.1} parent=11 // pred_region
        _
      $region16: #{_conv_forward_jit.1} parent=11 // pred_fallthru
        _
      // Predicated region
      $region17: #{_conv_forward_jit.1} parent=11 // pred_check
        %p137 = pneg %p91
      $region18: #{_conv_forward_jit.1} parent=11 // pred_check_branch
        %139 = sbr.rel (%p137) target = $region20
      $region19: #{_conv_forward_jit.1} parent=11 // pred_region
        _
      $region20: #{_conv_forward_jit.1} parent=11 // pred_fallthru
        _
    $region12: #{_conv_forward_jit.1} parent=5 // pred_fallthru
      _
    %p140 = scmp.lt.s32.totalorder %s9, 2
    // Predicated region
    $region21: #{_conv_forward_jit.1} parent=5 // pred_check
      %p141 = pneg %p140
    $region22: #{_conv_forward_jit.1} parent=5 // pred_check_branch
      %143 = sbr.rel (%p141) target = $region24
    $region23: #{_conv_forward_jit.1} parent=5 // pred_region
      // Predicated region
      $region25: #{_conv_forward_jit.1} parent=23 // pred_check
        %p144 = pneg %p43
      $region26: #{_conv_forward_jit.1} parent=23 // pred_check_branch
        %146 = sbr.rel (%p144) target = $region28
      $region27: #{_conv_forward_jit.1} parent=23 // pred_region
        %s147 = smul.u32 2, %s17
        %p148 = scmp.lt.s32.totalorder %s16, 1
        %s149 = scalar_select %p148, %s16, 1
        %p150 = scmp.lt.s32.totalorder %s147, 1
        %s151 = scalar_select %p150, %s147, 1
        %s152 = smul.addr %s149, 2
        %s153 = sadd.s32 %s151, %s152
        %s154 = smul.addr %s153, 4
        %s155 = scalar_lea.vmem %s0, %s154
        %s156 = smul.u32 2, %s17
      $region28: #{_conv_forward_jit.1} parent=23 // pred_fallthru
        _
    $region24: #{_conv_forward_jit.1} parent=5 // pred_fallthru
      _
    %p157 = scmp.le.s32.totalorder 1, %s9
    %p158 = scmp.lt.s32.totalorder %s9, 3
    %p159 = pnand %p157, %p158
    %p160 = pneg %p159
    // Predicated region
    $region29: #{_conv_forward_jit.1} parent=5 // pred_check
      _
    $region30: #{_conv_forward_jit.1} parent=5 // pred_check_branch
      %162 = sbr.rel (%p159) target = $region32
    $region31: #{_conv_forward_jit.1} parent=5 // pred_region
      %s163 = ssub.s32 %s9, 1
      %s164 = smul.u32 2, %s19
      %p165 = scmp.lt.s32.totalorder %s18, 1
      %s166 = scalar_select %p165, %s18, 1
      %p167 = scmp.lt.s32.totalorder %s164, 1
      %s168 = scalar_select %p167, %s164, 1
      %s169 = smul.addr %s166, 2
      %s170 = sadd.s32 %s168, %s169
      %s171 = smul.addr %s170, 4
      %s172 = scalar_lea.vmem %s0, %s171
      %p173 = pneg %p49
      %p174 = pneg %p46
      %p175 = pneg %p70
      %p176 = pneg %p67
      %p177 = pneg %p91
      %p178 = pneg %p88
      %p179 = pneg %p119
      %p180 = pneg %p116
      %s181 = smul.u32 2, %s19
      %p182 = scmp.lt.s32.totalorder %s18, 1
      %s183 = scalar_select %p182, %s18, 1
      %p184 = scmp.lt.s32.totalorder %s181, 1
      %s185 = scalar_select %p184, %s181, 1
      %s186 = smul.addr %s183, 8
      %s187 = sadd.s32 %s185, %s186
      %s188 = smul.addr %s187, 8
      %s189 = scalar_lea.vmem %s3, %s188
      %s190 = smul.u32 2, %s19
      %p191 = scmp.lt.s32.totalorder %s18, 1
      %s192 = scalar_select %p191, %s18, 1
      %p193 = scmp.lt.s32.totalorder %s190, 1
      %s194 = scalar_select %p193, %s190, 1
      %s195 = smul.addr %s192, 2
      %s196 = sadd.s32 %s194, %s195
      %s197 = smul.addr %s196, 4
      %s198 = scalar_lea.vmem %s0, %s197
      %s199 = smul.u32 2, %s19
      %s200 = smul.u32 2, %s19
      %p201 = scmp.lt.s32.totalorder %s18, 1
      %s202 = scalar_select %p201, %s18, 1
      %p203 = scmp.lt.s32.totalorder %s200, 1
      %s204 = scalar_select %p203, %s200, 1
      %s205 = smul.addr %s202, 8
      %s206 = sadd.s32 %s204, %s205
      %s207 = smul.addr %s206, 8
      %s208 = scalar_lea.vmem %s3, %s207
      %s209 = smul.u32 2, %s19
      %v211 = vld [vmem:[%s198] sm:$0xff]
      %v213 = vcombine.high %v211, %v211
      %v215 = vpack.c.bf16 %v211, %v211
      %v216 = vpack.c.bf16 %v213, %v213
      %v217 = vld [vmem:[%s1] sm:$0xf]
      %v218 = vld [vmem:[%s1 + $0x4] sm:$0xf]
      %v219 = vld [vmem:[%s1 + $0x8] sm:$0xf]
      %v220 = vld [vmem:[%s1 + $0xc] sm:$0xf]
      %v221 = vld [vmem:[%s2] sm:$0xff]
      %v222 = vld [vmem:[%s2 + $0x8] sm:$0xff]
      %v223 = vld [vmem:[%s2 + $0x10] sm:$0xff]
      %v224 = vld [vmem:[%s2 + $0x18] sm:$0xff]
      %226 = vset.pattern.permute.xlu0 0
      %227 = vperm.xlu0 %226, %v221
      %v228 = vpop.permute.xlu0 %227
      %231 = vset.pattern.permute.xlu0 0
      %232 = vperm.xlu0 %231, %v222
      %v233 = vpop.permute.xlu0 %232
      %236 = vset.pattern.permute.xlu0 0
      %237 = vperm.xlu0 %236, %v223
      %v238 = vpop.permute.xlu0 %237
      %241 = vset.pattern.permute.xlu0 0
      %242 = vperm.xlu0 %241, %v224
      %v243 = vpop.permute.xlu0 %242
      %v249 = vunpack.c.l.b16 %v217
      %v250 = vunpack.c.l.b16 %v218
      %v251 = vunpack.c.l.b16 %v219
      %v252 = vunpack.c.l.b16 %v220
      %v253 = vpack.c.b16 %v250, %v249
      %v254 = vpack.c.b16 %v252, %v251
      %vm255 = vcmask 31744
      %v257 = vsel %vm255, %v253, 0
      %v260 = vsel %vm255, %v254, 0
      %vm262 = vcmask 1041408
      %v264 = vsel %vm262, %v215, 0
      %v267 = vsel %vm262, %v216, 0
      %269 = vmatprep.subr.bf16.mxu0 %v267
      %270 = vmatpush1.bf16.msra.mxu0 %v264
      %271 = vmatprep.subr.bf16.mxu0 0
      %272 = vmatpush1.bf16.msra.mxu0 0
      %273 = vmatprep.subr.bf16.mxu0 0
      %274 = vmatpush1.bf16.msra.mxu0 0
      %275 = vmatprep.subr.bf16.mxu0 0
      %276 = vmatpush1.bf16.msra.mxu0 0
      %277 = vmatprep.subr.bf16.mxu0 0
      %278 = vmatpush1.bf16.msra.mxu0 0
      %279 = vmatprep.subr.bf16.mxu0 0
      %280 = vmatpush1.bf16.msra.mxu0 0
      %281 = vmatprep.subr.bf16.mxu0 0
      %282 = vmatpush1.bf16.msra.mxu0 0
      %283 = vmatprep.subr.bf16.mxu0 0
      %284 = vmatpush1.bf16.msra.mxu0 0
      %285 = vmatprep.subr.bf16.mxu0 0
      %286 = vmatpush1.bf16.msra.mxu0 0
      %287 = vmatprep.subr.bf16.mxu0 0
      %288 = vmatpush1.bf16.msra.mxu0 0
      %289 = vmatprep.subr.bf16.mxu0 0
      %290 = vmatpush1.bf16.msra.mxu0 0
      %291 = vmatprep.subr.bf16.mxu0 0
      %292 = vmatpush1.bf16.msra.mxu0 0
      %293 = vmatprep.subr.bf16.mxu0 0
      %294 = vmatpush1.bf16.msra.mxu0 0
      %295 = vmatprep.subr.bf16.mxu0 0
      %296 = vmatpush1.bf16.msra.mxu0 0
      %297 = vmatprep.subr.bf16.mxu0 0
      %298 = vmatpush1.bf16.msra.mxu0 0
      %299 = vmatprep.subr.bf16.mxu0 0
      %300 = vmatpush1.bf16.msra.mxu0 0
      %301 = vmatprep.mubr.bf16.mxu0 0
      %302 = vmatmul.mubr.bf16.gmra.mrb[0].mxu0 %v257
      %v303 = vpop.f32.mrb[0].mxu0
      %v304 = vadd.f32 %v228, %v303
      %v305 = vpop.f32.mrb[0].mxu0
      %v306 = vadd.f32 %v228, %v305
      %v307 = vpop.f32.mrb[0].mxu0
      %v308 = vadd.f32 %v233, %v307
      %v309 = vpop.f32.mrb[0].mxu0
      %v310 = vadd.f32 %v233, %v309
      %311 = vmatprep.mubr.bf16.mxu0 0
      %312 = vmatmul.mubr.bf16.gmra.mrb[0].mxu0 %v260
      %v313 = vpop.f32.mrb[0].mxu0
      %v314 = vadd.f32 %v238, %v313
      %v315 = vpop.f32.mrb[0].mxu0
      %v316 = vadd.f32 %v238, %v315
      %v317 = vpop.f32.mrb[0].mxu0
      %v318 = vadd.f32 %v243, %v317
      %v319 = vpop.f32.mrb[0].mxu0
      %v320 = vadd.f32 %v243, %v319
      %321 = vdwg.mxu0
      %v322 = vmax.f32 %v304, 0.0
      %v323 = vmax.f32 %v306, 0.0
      %v324 = vmax.f32 %v308, 0.0
      %v325 = vmax.f32 %v310, 0.0
      %v326 = vmax.f32 %v314, 0.0
      %v327 = vmax.f32 %v316, 0.0
      %v328 = vmax.f32 %v318, 0.0
      %v329 = vmax.f32 %v320, 0.0
      %330 = vst [vmem:[%s208] sm:$0xff] %v322
      %331 = vst [vmem:[%s208 + $0x8] sm:$0xff] %v323
      %332 = vst [vmem:[%s208 + $0x10] sm:$0xff] %v324
      %333 = vst [vmem:[%s208 + $0x18] sm:$0xff] %v325
      %334 = vst [vmem:[%s208 + $0x20] sm:$0xff] %v326
      %335 = vst [vmem:[%s208 + $0x28] sm:$0xff] %v327
      %336 = vst [vmem:[%s208 + $0x30] sm:$0xff] %v328
      %337 = vst [vmem:[%s208 + $0x38] sm:$0xff] %v329
      %s338 = smul.u32 2, %s19
      %p339 = scmp.lt.s32.totalorder %s18, 1
      %s340 = scalar_select %p339, %s18, 1
      %p341 = scmp.lt.s32.totalorder %s338, 1
      %s342 = scalar_select %p341, %s338, 1
      %s343 = smul.addr %s340, 8
      %s344 = sadd.s32 %s342, %s343
      %s345 = smul.addr %s344, 8
      %s346 = scalar_lea.vmem %s3, %s345
      // Predicated region
      $region33: #{_conv_forward_jit.1} parent=31 // pred_check
        %p347 = pneg %p116
      $region34: #{_conv_forward_jit.1} parent=31 // pred_check_branch
        %349 = sbr.rel (%p347) target = $region36
      $region35: #{_conv_forward_jit.1} parent=31 // pred_region
        %s350 = smul.u32 2, %s19
      $region36: #{_conv_forward_jit.1} parent=31 // pred_fallthru
        _
    $region32: #{_conv_forward_jit.1} parent=5 // pred_fallthru
      _
    %p351 = scmp.le.s32.totalorder 2, %s9
    // Predicated region
    $region37: #{_conv_forward_jit.1} parent=5 // pred_check
      %p352 = pneg %p351
    $region38: #{_conv_forward_jit.1} parent=5 // pred_check_branch
      %354 = sbr.rel (%p352) target = $region40
    $region39: #{_conv_forward_jit.1} parent=5 // pred_region
      %s355 = ssub.s32 %s9, 2
      // Predicated region
      $region41: #{_conv_forward_jit.1} parent=39 // pred_check
        %p356 = pneg %p122
      $region42: #{_conv_forward_jit.1} parent=39 // pred_check_branch
        %358 = sbr.rel (%p356) target = $region44
      $region43: #{_conv_forward_jit.1} parent=39 // pred_region
        %s359 = smul.u32 2, %s21
        %p360 = scmp.lt.s32.totalorder %s20, 1
        %s361 = scalar_select %p360, %s20, 1
        %p362 = scmp.lt.s32.totalorder %s359, 1
        %s363 = scalar_select %p362, %s359, 1
        %s364 = smul.addr %s361, 8
        %s365 = sadd.s32 %s363, %s364
        %s366 = smul.addr %s365, 8
        %s367 = scalar_lea.vmem %s3, %s366
      $region44: #{_conv_forward_jit.1} parent=39 // pred_fallthru
        _
    $region40: #{_conv_forward_jit.1} parent=5 // pred_fallthru
      _
  $region6: #{_conv_forward_jit.1} parent=0 // loop_footer
    %s13 = sadd.s32 1, %s9
  $region7: #{_conv_forward_jit.1} parent=0 // loop_footer_branch
    %8 = sbr.rel target = $region3
  $region8: #{_conv_forward_jit.1} parent=0 // loop_exit
    _

</llo_original>
